<compile_context>
chip_gen: v6e
topology: v6e:2x2x1
jax: 0.10.0
libtpu: 0.0.40
codegen_flags: <defaults>
</compile_context>

<pallas_src>
import functools
import math

import jax
import jax.numpy as jnp
from jax.experimental import pallas as pl
from jax.experimental.pallas import tpu as pltpu

_LANES = 128
_CHUNK_ROWS = 512                      # rows folded per inner step (bounds VMEM temps)
_TARGET_STEP_BYTES = 8 * 1024 * 1024   # combined input bytes per grid step


def _sublane_mult(dtype):
    """Sublane packing multiple: 8 for 4-byte, 16 for 2-byte, 32 for 1-byte dtypes."""
    return max(8, 32 // jnp.dtype(dtype).itemsize)


def _detect_num_cores():
    """Best-effort TensorCore count for the shard axis; 1 on any uncertainty."""
    try:
        info = pltpu.get_tpu_info()
    except Exception:
        return 1
    for name in ("num_cores", "num_tensorcores", "tensorcore_count",
                 "num_tensor_cores", "cores_per_chip"):
        v = getattr(info, name, None)
        if isinstance(v, int) and 1 <= v <= 16:
            return min(v, 2)
    return 1


def _bce_terms_f32(o, t):
    """Per-element BCE term, exactly mirroring the torch forward's zero handling."""
    o = o.astype(jnp.float32)
    t = t.astype(jnp.float32)
    comp = 1.0 - o
    comp = jnp.where(comp == 0.0, jnp.float32(1e-20), comp)   # (1-output)==0 -> 1e-20
    main = jnp.where(o == 0.0, jnp.float32(1e-20), o)         # output==0     -> 1e-20
    log_main = jnp.log(main)
    log_comp = jnp.log(comp)
    # t*log_main + (1-t)*log_comp  ==  log_comp + t*(log_main - log_comp)
    return log_comp + t * (log_main - log_comp)


def _bce_kernel(o_ref, t_ref, acc_ref, *, tile_r, chunk_r, tiles_per_shard,
                rows_valid, ragged):
    c = pl.program_id(0)   # shard axis ("parallel")
    i = pl.program_id(1)   # row-tile axis ("arbitrary": streaming reduction)

    @pl.when(i == 0)
    def _init():
        acc_ref[...] = jnp.zeros_like(acc_ref)

    # Logical (unclamped) first row of this tile; used only for ragged masking.
    tile_row0 = (c * tiles_per_shard + i) * tile_r
    n_chunks = tile_r // chunk_r

    def body(j, acc):
        r0 = pl.multiple_of(j * chunk_r, chunk_r)
        o = o_ref[pl.ds(r0, chunk_r), :]
        t = t_ref[pl.ds(r0, chunk_r), :]
        term = _bce_terms_f32(o, t)            # upcast + BCE math on VPU/EUP
        if ragged:
            row_ids = (tile_row0 + r0) + jax.lax.broadcasted_iota(
                jnp.int32, term.shape, 0)
            term = jnp.where(row_ids < rows_valid, term, jnp.float32(0.0))
        # Fold (chunk_r, 128) -> (8, 128) with leading-axis adds only (no XLU).
        return acc + term.reshape(chunk_r // 8, 8, _LANES).sum(axis=0)

    acc = jax.lax.fori_loop(0, n_chunks, body, jnp.zeros((8, _LANES), jnp.float32))
    acc_ref[...] += acc[None]


def _bce_main_sum(o2, t2, num_shards):
    """Sum of BCE terms over a (rows, 128) slab via the Pallas kernel."""
    rows = o2.shape[0]
    max_mult = max(_sublane_mult(o2.dtype), _sublane_mult(t2.dtype))
    itemsum = jnp.dtype(o2.dtype).itemsize + jnp.dtype(t2.dtype).itemsize

    if rows >= _CHUNK_ROWS:
        chunk_r = _CHUNK_ROWS
        target_rows = max(chunk_r,
                          (_TARGET_STEP_BYTES // (_LANES * itemsum))
                          // chunk_r * chunk_r)
        tile_r = min(target_rows, (rows // chunk_r) * chunk_r)
    else:
        tile_r = (rows // max_mult) * max_mult   # >= max_mult by caller contract
        chunk_r = tile_r

    n_tiles = pl.cdiv(rows, tile_r)
    num_shards = max(1, min(int(num_shards), n_tiles))
    tiles_per_shard = pl.cdiv(n_tiles, num_shards)
    # Ragged iff the last tile is partial or the shard split over-covers tiles.
    ragged = (num_shards * tiles_per_shard * tile_r != rows)

    # Clamp so over-covering grid steps re-read the last block instead of going
    # out of bounds; the in-kernel row mask zeroes their contribution.
    in_map = lambda c, i: (jnp.minimum(c * tiles_per_shard + i, n_tiles - 1), 0)
    in_spec = pl.BlockSpec((tile_r, _LANES), in_map)

    block_bytes = tile_r * _LANES * itemsum          # both inputs, one step
    vmem_limit = int(min(32 * 1024 * 1024,
                         max(16 * 1024 * 1024, 2 * block_bytes + 4 * 1024 * 1024)))

    partials = pl.pallas_call(
        functools.partial(_bce_kernel, tile_r=tile_r, chunk_r=chunk_r,
                          tiles_per_shard=tiles_per_shard, rows_valid=rows,
                          ragged=ragged),
        out_shape=jax.ShapeDtypeStruct((num_shards, 8, _LANES), jnp.float32),
        grid_spec=pltpu.PrefetchScalarGridSpec(
            num_scalar_prefetch=0,
            grid=(num_shards, tiles_per_shard),
            in_specs=[in_spec, in_spec],
            out_specs=pl.BlockSpec((1, 8, _LANES), lambda c, i: (c, 0, 0)),
        ),
        compiler_params=pltpu.CompilerParams(
            dimension_semantics=("parallel", "arbitrary"),
            vmem_limit_bytes=vmem_limit),
    )(o2, t2)

    return jnp.sum(partials, dtype=jnp.float32)


def bce_loss(output, target, *, num_shards=None):
    """Pallas TPU BCE loss matching the torch module. Returns (1, 1) float32."""
    assert output.shape == target.shape, "output/target shape mismatch"
    total = math.prod(output.shape)
    assert total > 0, "empty input"

    if num_shards is None:
        num_shards = _detect_num_cores()

    flat_o = output.reshape(-1)
    flat_t = target.reshape(-1)

    rows = total // _LANES
    max_mult = max(_sublane_mult(output.dtype), _sublane_mult(target.dtype))

    term_sum = jnp.float32(0.0)
    covered = 0
    if rows >= max_mult:
        covered = rows * _LANES
        if covered == total:
            o2, t2 = flat_o, flat_t                 # zero-copy: reshape is a bitcast
        else:
            # Rare ragged (<128-element) tail: slice the lane-aligned prefix for the
            # kernel; the tiny tail is folded with plain JAX below.
            o2, t2 = flat_o[:covered], flat_t[:covered]
        term_sum = term_sum + _bce_main_sum(o2.reshape(rows, _LANES),
                                            t2.reshape(rows, _LANES), num_shards)

    if covered < total:
        # Sub-row remainder (or the whole input if it is tiny): trivial cost.
        term_sum = term_sum + jnp.sum(_bce_terms_f32(flat_o[covered:],
                                                     flat_t[covered:]))

    loss = -(term_sum / jnp.float32(total))
    return loss.reshape(1, 1)


def _bce_ref(output, target):
    """Plain-JAX reference mirroring the PyTorch forward exactly."""
    o = output.astype(jnp.float32)
    t = target.astype(jnp.float32)
    comp = 1.0 - o
    comp = jnp.where(comp == 0.0, 1e-20, comp)
    main = jnp.where(o == 0.0, 1e-20, o)
    loss = -jnp.mean(t * jnp.log(main) + (1.0 - t) * jnp.log(comp))
    return loss.reshape(1, 1)


if __name__ == "__main__":
    key = jax.random.PRNGKey(0)
    keys = jax.random.split(key, 10)

    # Case 1: small NCHW f32 with exact 0/1 probabilities (zero -> 1e-20 paths).
    B, C, H, W = 2, 4, 16, 16
    out1 = jax.random.uniform(keys[0], (B, C, H, W), dtype=jnp.float32)
    out1 = out1.at[0, 0, 0, 0].set(0.0)     # output == 0 branch
    out1 = out1.at[0, 0, 0, 1].set(1.0)     # (1 - output) == 0 branch
    tgt1 = (jax.random.uniform(keys[1], (B, C, H, W)) > 0.5).astype(jnp.float32)
    got1 = jax.block_until_ready(bce_loss(out1, tgt1))
    ref1 = jax.block_until_ready(_bce_ref(out1, tgt1))
    assert got1.shape == (1, 1) and got1.dtype == jnp.float32
    assert jnp.allclose(got1, ref1, rtol=1e-5, atol=1e-5), (got1, ref1)

    # Case 2: larger bf16 inputs -> multi-chunk tile, native bf16 through HBM.
    out2 = jax.random.uniform(keys[2], (4, 8, 128, 128),
                              dtype=jnp.float32).astype(jnp.bfloat16)
    tgt2 = (jax.random.uniform(keys[3], (4, 8, 128, 128)) > 0.5).astype(jnp.bfloat16)
    got2 = jax.block_until_ready(bce_loss(out2, tgt2))
    ref2 = jax.block_until_ready(_bce_ref(out2, tgt2))
    assert jnp.allclose(got2, ref2, rtol=1e-3, atol=1e-3), (got2, ref2)

    # Case 3: row count not a multiple of the tile -> in-kernel ragged-row mask.
    out3 = jax.random.uniform(keys[4], (3, 7, 128), dtype=jnp.float32)
    tgt3 = (jax.random.uniform(keys[5], (3, 7, 128)) > 0.5).astype(jnp.float32)
    got3 = jax.block_until_ready(bce_loss(out3, tgt3))
    ref3 = jax.block_until_ready(_bce_ref(out3, tgt3))
    assert jnp.allclose(got3, ref3, rtol=1e-5, atol=1e-5), (got3, ref3)

    # Case 4: total not a multiple of 128 -> kernel on aligned prefix + JAX tail.
    out4 = jax.random.uniform(keys[6], (5, 7, 61), dtype=jnp.float32)
    tgt4 = (jax.random.uniform(keys[7], (5, 7, 61)) > 0.5).astype(jnp.float32)
    got4 = jax.block_until_ready(bce_loss(out4, tgt4))
    ref4 = jax.block_until_ready(_bce_ref(out4, tgt4))
    assert jnp.allclose(got4, ref4, rtol=1e-5, atol=1e-5), (got4, ref4)

    # Case 5: tiny input (< one 128-lane row tile) -> pure wrapper fallback path.
    out5 = jax.random.uniform(keys[8], (2, 3, 7, 5), dtype=jnp.float32)
    tgt5 = (jax.random.uniform(keys[9], (2, 3, 7, 5)) > 0.5).astype(jnp.float32)
    got5 = jax.block_until_ready(bce_loss(out5, tgt5))
    ref5 = jax.block_until_ready(_bce_ref(out5, tgt5))
    assert jnp.allclose(got5, ref5, rtol=1e-5, atol=1e-5), (got5, ref5)

    print("KERNEL_OK")
</pallas_src>

<mosaic_0001>
module attributes {stable_mosaic.version = 11 : i64} {
  func.func @_bce_kernel(%arg0: i32, %arg1: i32, %arg2: memref<16x128xf32, #tpu.memory_space<vmem>>, %arg3: memref<16x128xf32, #tpu.memory_space<vmem>>, %arg4: memref<1x8x128xf32, #tpu.memory_space<vmem>>) attributes {dimension_semantics = [#tpu.dimension_semantics<parallel>, #tpu.dimension_semantics<arbitrary>], iteration_bounds = array<i64: 1, 1>, scalar_prefetch = 0 : i64, scratch_operands = 0 : i64, tpu.core_type = #tpu.core_type<tc>, window_params = [{transform_indices = @transform_0, window_bounds = array<i64: 16, 128>}, {transform_indices = @transform_1, window_bounds = array<i64: 16, 128>}, {transform_indices = @transform_2, window_bounds = array<i64: 1, 8, 128>}]} {
    %c0_i32 = arith.constant 0 : i32
    %0 = arith.cmpi eq, %arg1, %c0_i32 : i32
    %1 = arith.extui %0 : i1 to i32
    %c0_i32_0 = arith.constant 0 : i32
    %2 = arith.cmpi ne, %1, %c0_i32_0 : i32
    scf.if %2 {
      %cst_15 = arith.constant 0.000000e+00 : f32
      %32 = vector.broadcast %cst_15 : f32 to vector<1x8x128xf32>
      %c0_16 = arith.constant 0 : index
      %c0_17 = arith.constant 0 : index
      %c0_18 = arith.constant 0 : index
      %33 = vector.load %arg4[%c0_16, %c0_17, %c0_18] : memref<1x8x128xf32, #tpu.memory_space<vmem>>, vector<1x8x128xf32>
      tpu.vector_store %arg4[%c0_16, %c0_17, %c0_18], %32 {strides = array<i32>} : memref<1x8x128xf32, #tpu.memory_space<vmem>>, vector<1x8x128xf32>,
    } else {
    }
    %cst = arith.constant 0.000000e+00 : f32
    %3 = vector.broadcast %cst : f32 to vector<8x128xf32>
    %c0_i32_1 = arith.constant 0 : i32
    %c16_i32 = arith.constant 16 : i32
    %4 = arith.muli %c0_i32_1, %c16_i32 : i32
    %5 = tpu.assume_multiple %4, 16 : i32
    %6 = arith.index_cast %5 : i32 to index
    %c0 = arith.constant 0 : index
    %7 = vector.load %arg2[%6, %c0] : memref<16x128xf32, #tpu.memory_space<vmem>>, vector<16x128xf32>
    %8 = arith.index_cast %5 : i32 to index
    %c0_2 = arith.constant 0 : index
    %9 = vector.load %arg3[%8, %c0_2] : memref<16x128xf32, #tpu.memory_space<vmem>>, vector<16x128xf32>
    %cst_3 = arith.constant 1.000000e+00 : f32
    %10 = vector.broadcast %cst_3 : f32 to vector<16x128xf32>
    %11 = arith.subf %10, %7 : vector<16x128xf32>
    %cst_4 = arith.constant 0.000000e+00 : f32
    %12 = vector.broadcast %cst_4 : f32 to vector<16x128xf32>
    %13 = arith.cmpf oeq, %11, %12 : vector<16x128xf32>
    %cst_5 = arith.constant 9.99999968E-21 : f32
    %14 = vector.broadcast %cst_5 : f32 to vector<16x128xf32>
    %15 = arith.select %13, %14, %11 : vector<16x128xi1>, vector<16x128xf32>
    %cst_6 = arith.constant 0.000000e+00 : f32
    %16 = vector.broadcast %cst_6 : f32 to vector<16x128xf32>
    %17 = arith.cmpf oeq, %7, %16 : vector<16x128xf32>
    %cst_7 = arith.constant 9.99999968E-21 : f32
    %18 = vector.broadcast %cst_7 : f32 to vector<16x128xf32>
    %19 = arith.select %17, %18, %7 : vector<16x128xi1>, vector<16x128xf32>
    %20 = math.log %19 : vector<16x128xf32>
    %21 = math.log %15 : vector<16x128xf32>
    %22 = arith.subf %20, %21 : vector<16x128xf32>
    %23 = arith.mulf %9, %22 : vector<16x128xf32>
    %24 = arith.addf %21, %23 : vector<16x128xf32>
    %25 = vector.shape_cast %24 : vector<16x128xf32> to vector<2x8x128xf32>
    %cst_8 = arith.constant dense<0.000000e+00> : vector<8x128xf32>
    %26 = vector.multi_reduction <add>, %25, %cst_8 [0] : vector<2x8x128xf32> to vector<8x128xf32>
    %27 = arith.addf %3, %26 : vector<8x128xf32>
    %c1_i32 = arith.constant 1 : i32
    %c0_9 = arith.constant 0 : index
    %c0_10 = arith.constant 0 : index
    %c0_11 = arith.constant 0 : index
    %28 = vector.load %arg4[%c0_9, %c0_10, %c0_11] : memref<1x8x128xf32, #tpu.memory_space<vmem>>, vector<1x8x128xf32>
    %29 = vector.shape_cast %27 : vector<8x128xf32> to vector<1x8x128xf32>
    %30 = arith.addf %28, %29 : vector<1x8x128xf32>
    %c0_12 = arith.constant 0 : index
    %c0_13 = arith.constant 0 : index
    %c0_14 = arith.constant 0 : index
    %31 = vector.load %arg4[%c0_12, %c0_13, %c0_14] : memref<1x8x128xf32, #tpu.memory_space<vmem>>, vector<1x8x128xf32>
    tpu.vector_store %arg4[%c0_12, %c0_13, %c0_14], %30 {strides = array<i32>} : memref<1x8x128xf32, #tpu.memory_space<vmem>>, vector<1x8x128xf32>,
    return
  }
  func.func @transform_0(%arg0: i32, %arg1: i32) -> (i32, i32) {
    %c1_i32 = arith.constant 1 : i32
    %0 = arith.muli %arg0, %c1_i32 : i32
    %1 = arith.addi %0, %arg1 : i32
    %c0_i32 = arith.constant 0 : i32
    %2 = arith.minsi %1, %c0_i32 : i32
    %c0_i32_0 = arith.constant 0 : i32
    %c0_i32_1 = arith.constant 0 : i32
    return %2, %c0_i32_0 : i32, i32
  }
  func.func @transform_1(%arg0: i32, %arg1: i32) -> (i32, i32) {
    %c1_i32 = arith.constant 1 : i32
    %0 = arith.muli %arg0, %c1_i32 : i32
    %1 = arith.addi %0, %arg1 : i32
    %c0_i32 = arith.constant 0 : i32
    %2 = arith.minsi %1, %c0_i32 : i32
    %c0_i32_0 = arith.constant 0 : i32
    %c0_i32_1 = arith.constant 0 : i32
    return %2, %c0_i32_0 : i32, i32
  }
  func.func @transform_2(%arg0: i32, %arg1: i32) -> (i32, i32, i32) {
    %c0_i32 = arith.constant 0 : i32
    %c0_i32_0 = arith.constant 0 : i32
    %c0_i32_1 = arith.constant 0 : i32
    return %arg0, %c0_i32, %c0_i32_0 : i32, i32, i32
  }
}

</mosaic_0001>

<llo_original>
// kernel: tpu_custom_call.1
$region0: #{tpu_custom_call.1}
  #allocation0 [shape = 'u32[]', space=smem, size = 0x4, offset = 0x4, fixed_abs, tag = 'smem constant byte address 0x4 - core index']
  #allocation1 [shape = 'u32[144,128]{1,0:T(1,128)}', space=vmem, size = 0x12000, scoped, tag = 'internal scratch']
  %s0 = inlined_call_operand.hbm [shape: f32[16,128], index: 0, kind: input, shape index: {}]
  %s1 = inlined_call_operand.hbm [shape: f32[16,128], index: 1, kind: input, shape index: {}]
  %s2 = inlined_call_operand.hbm [shape: f32[1,8,128], index: 2, kind: output, shape index: {}]
  %s3 = sld [smem:[#allocation0]]
  $region30: #{tpu_custom_call.1} parent=0
    _
  %s5 = ssub.s32 1, %s3
  %s6 = scalar_select 0, %s5, %s3
  $region1: #{tpu_custom_call.1} parent=0
    #allocation2 [shape = 'u8[8192]{0}', space=vmem, size = 0x2000, scoped, tag = 'input window, operand 0, single buffered']
    #allocation3 [shape = 's32[1]{0}', space=sflag, size = 0x4, scoped, tag = 'scoped memory for tpu_custom_call.1']
    #allocation4 [shape = 's32[1]{0}', space=sflag, size = 0x4, scoped, tag = 'scoped memory for tpu_custom_call.1']
    #allocation5 [shape = 'u8[8192]{0}', space=vmem, size = 0x2000, scoped, tag = 'input window, operand 1, single buffered']
    #allocation6 [shape = 's32[1]{0}', space=sflag, size = 0x4, scoped, tag = 'scoped memory for tpu_custom_call.1']
    #allocation7 [shape = 'u8[4096]{0}', space=vmem, size = 0x1000, scoped, tag = 'output window, operand 0, single buffered']
    %7 = vsyncpa [#allocation3], 0
    %8 = vsyncpa [#allocation6], 0
    %9 = vsyncpa [#allocation4], 0
    // Predicated region
    $region2: #{tpu_custom_call.1} parent=1 // pred_check
      _
    $region3: #{tpu_custom_call.1} parent=1 // pred_check_branch
      %11 = sbr.rel (0) target = $region5
    $region4: #{tpu_custom_call.1} parent=1 // pred_region
      %s12 = sadd.s32 0, 0
      %p13 = scmp.lt.s32.totalorder %s12, 0
      %s14 = scalar_select %p13, %s12, 0
      %s15 = smul.u32 2, %s14
      %s17 = ssub.s32 256, 256
      %18 = vsyncadd [#allocation3], %s17
      %s19 = smul.addr %s15, 128
      %s20 = scalar_lea.hbm %s0, %s19
      %s21 = sshll.u32 [#allocation2], 4
      %s22 = int_to_ptr.vmem [resolvable:$true] %s21
      %27 = dma.hbm_to_vmem [thread:$0]  %s20, 256, %s22, [#allocation3], 128, 128, 8
    $region5: #{tpu_custom_call.1} parent=1 // pred_fallthru
      _
    // Predicated region
    $region6: #{tpu_custom_call.1} parent=1 // pred_check
      _
    $region7: #{tpu_custom_call.1} parent=1 // pred_check_branch
      %29 = sbr.rel (0) target = $region9
    $region8: #{tpu_custom_call.1} parent=1 // pred_region
      %s30 = sadd.s32 0, 0
      %p31 = scmp.lt.s32.totalorder %s30, 0
      %s32 = scalar_select %p31, %s30, 0
      %s33 = smul.u32 2, %s32
      %s35 = ssub.s32 256, 256
      %36 = vsyncadd [#allocation6], %s35
      %s37 = smul.addr %s33, 128
      %s38 = scalar_lea.hbm %s1, %s37
      %s39 = sshll.u32 [#allocation5], 4
      %s40 = int_to_ptr.vmem [resolvable:$true] %s39
      %45 = dma.hbm_to_vmem [thread:$0]  %s38, 256, %s40, [#allocation6], 128, 128, 8
    $region9: #{tpu_custom_call.1} parent=1 // pred_fallthru
      _
    // Predicated region
    $region10: #{tpu_custom_call.1} parent=1 // pred_check
      _
    $region11: #{tpu_custom_call.1} parent=1 // pred_check_branch
      %47 = sbr.rel (0) target = $region13
    $region12: #{tpu_custom_call.1} parent=1 // pred_region
      %48 = dma.done [#allocation3], 256
    $region13: #{tpu_custom_call.1} parent=1 // pred_fallthru
      _
    // Predicated region
    $region14: #{tpu_custom_call.1} parent=1 // pred_check
      _
    $region15: #{tpu_custom_call.1} parent=1 // pred_check_branch
      %50 = sbr.rel (0) target = $region17
    $region16: #{tpu_custom_call.1} parent=1 // pred_region
      %51 = dma.done [#allocation6], 256
    $region17: #{tpu_custom_call.1} parent=1 // pred_fallthru
      _
    %s52 = sadd.s32 0, 0
    %p53 = scmp.lt.s32.totalorder %s52, 0
    %s54 = scalar_select %p53, %s52, 0
    %s55 = smul.u32 2, %s54
    %s56 = sadd.s32 0, 0
    %p57 = scmp.lt.s32.totalorder %s56, 0
    %s58 = scalar_select %p57, %s56, 0
    %s59 = smul.u32 2, %s58
    %p60 = scmp.eq.s32.totalorder 0, 0
    // Predicated region
    $region18: #{tpu_custom_call.1} parent=1 // pred_check
      %p61 = pneg %p60
    $region19: #{tpu_custom_call.1} parent=1 // pred_check_branch
      %63 = sbr.rel (%p61) target = $region21
    $region20: #{tpu_custom_call.1} parent=1 // pred_region
      %64 = vst [vmem:[#allocation7] sm:$0xff] 0.0
    $region21: #{tpu_custom_call.1} parent=1 // pred_fallthru
      _
    %v65 = vld [vmem:[#allocation2] sm:$0xff]
    %v66 = vld [vmem:[#allocation2 + $0x8] sm:$0xff]
    %v67 = vld [vmem:[#allocation5] sm:$0xff]
    %v68 = vld [vmem:[#allocation5 + $0x8] sm:$0xff]
    %v69 = vsub.f32 1.0, %v65
    %v70 = vsub.f32 1.0, %v66
    %vm71 = vcmp.eq.f32.partialorder %v69, 0.0
    %vm72 = vcmp.eq.f32.partialorder %v70, 0.0
    %v73 = vsel %vm71, 1e-20, %v69
    %v74 = vsel %vm72, 1e-20, %v70
    %vm75 = vcmp.eq.f32.partialorder %v65, 0.0
    %vm76 = vcmp.eq.f32.partialorder %v66, 0.0
    %v77 = vsel %vm75, 1e-20, %v65
    %v78 = vsel %vm76, 1e-20, %v66
    %v79 = vlog2.pop %v77
    %v80 = vmul.f32 %v79, 0.6931472
    %v81 = vlog2.pop %v78
    %v82 = vmul.f32 %v81, 0.6931472
    %v83 = vlog2.pop %v73
    %v84 = vmul.f32 %v83, 0.6931472
    %v85 = vlog2.pop %v74
    %v86 = vmul.f32 %v85, 0.6931472
    %v87 = vsub.f32 %v80, %v84
    %v88 = vsub.f32 %v82, %v86
    %v89 = vmul.f32 %v67, %v87
    %v90 = vmul.f32 %v68, %v88
    %v91 = vadd.f32 %v84, %v89
    %v92 = vadd.f32 %v86, %v90
    %v93 = vadd.f32 %v91, %v92
    %v94 = vadd.f32 %v93, 0.0
    %v95 = vld [vmem:[#allocation7] sm:$0xff]
    %v96 = vadd.f32 %v95, %v94
    %97 = vst [vmem:[#allocation7] sm:$0xff] %v96
    // Predicated region
    $region22: #{tpu_custom_call.1} parent=1 // pred_check
      _
    $region23: #{tpu_custom_call.1} parent=1 // pred_check_branch
      %99 = sbr.rel (0) target = $region25
    $region24: #{tpu_custom_call.1} parent=1 // pred_region
      %s101 = ssub.s32 128, 128
      %102 = vsyncadd [#allocation4], %s101
      %s104 = sshll.u32 [#allocation7], 4
      %s105 = int_to_ptr.vmem [resolvable:$true] %s104
      %107 = dma.vmem_to_hbm [thread:$0]  %s105, 128, %s2, [#allocation4]
    $region25: #{tpu_custom_call.1} parent=1 // pred_fallthru
      _
    // Predicated region
    $region26: #{tpu_custom_call.1} parent=1 // pred_check
      _
    $region27: #{tpu_custom_call.1} parent=1 // pred_check_branch
      %109 = sbr.rel (0) target = $region29
    $region28: #{tpu_custom_call.1} parent=1 // pred_region
      %110 = dma.done [#allocation4], 128
    $region29: #{tpu_custom_call.1} parent=1 // pred_fallthru
      _
    %111 = vsyncpa [#allocation3], 1
    %112 = vsyncpa [#allocation6], 1
    %113 = vsyncpa [#allocation4], 1

</llo_original>
